<compile_context>
chip_gen: v7x
topology: tpu7x:2x2x1
jax: 0.10.0
libtpu: 0.0.40
codegen_flags: <defaults>
</compile_context>

<pallas_src>
import jax
import jax.numpy as jnp
from jax import lax
from jax.experimental import pallas as pl
from jax.experimental.pallas import tpu as pltpu

INPUT_SIZE = 10
L1 = 32
L2 = 16
OUT = 1
DROP_P = 0.1
DROP_THRESH = int(DROP_P * (1 << 23))      # keep if (hash & 0x7FFFFF) >= threshold
KEEP_SCALE = 1.0 / (1.0 - DROP_P)


def mlp_attention_kernel(seed_ref, bo_ref,
                         x_ref, w1_ref, b1_ref, w2_ref, b2_ref,
                         wqkv_ref, bqkv_ref, wo_ref,
                         o_ref):
    x = x_ref[...]                                   # (BB, T, D_in) f32
    bb, t, _ = x.shape

    # ---- layer1: Linear(D_in -> L1), weight already (in, out) -----------------
    h1 = jnp.einsum('btd,dh->bth', x, w1_ref[...],
                    preferred_element_type=jnp.float32) + b1_ref[...]

    # ---- dropout(p=0.1), training semantics (inverted dropout) ----------------
    # Stateless hash PRNG keyed on (seed, global element index); integer-domain
    # keep decision (no int->float convert), tile-independent via program_id.
    pid = pl.program_id(0).astype(jnp.uint32)
    b_i = lax.broadcasted_iota(jnp.int32, h1.shape, 0).astype(jnp.uint32)
    t_i = lax.broadcasted_iota(jnp.int32, h1.shape, 1).astype(jnp.uint32)
    h_i = lax.broadcasted_iota(jnp.int32, h1.shape, 2).astype(jnp.uint32)
    idx = ((pid * jnp.uint32(bb) + b_i) * jnp.uint32(t) + t_i) * jnp.uint32(L1) + h_i
    z = idx + seed_ref[0].astype(jnp.uint32) * jnp.uint32(0x9E3779B9)
    z = z ^ (z >> 16)
    z = z * jnp.uint32(0x7FEB352D)
    z = z ^ (z >> 15)
    z = z * jnp.uint32(0x846CA68B)
    z = z ^ (z >> 16)
    keep = (z & jnp.uint32(0x7FFFFF)) >= jnp.uint32(DROP_THRESH)
    h1 = jnp.where(keep, h1 * jnp.float32(KEEP_SCALE), 0.0)

    h1 = jnp.tanh(h1)

    # ---- layer2: Linear(L1 -> L2) + tanh --------------------------------------
    h2 = jnp.tanh(jnp.einsum('bth,hk->btk', h1, w2_ref[...],
                             preferred_element_type=jnp.float32) + b2_ref[...])

    # ---- SelfAttention: fused Q/K/V projection (scale folded into wq/bq) ------
    qkv = jnp.einsum('btk,kf->btf', h2, wqkv_ref[...],
                     preferred_element_type=jnp.float32) + bqkv_ref[...]
    q = qkv[:, :, 0 * L2:1 * L2]
    k = qkv[:, :, 1 * L2:2 * L2]
    v = qkv[:, :, 2 * L2:3 * L2]

    # scores: d is the contracting dim for both operands (no in-kernel transpose)
    scores = jnp.einsum('bqd,bkd->bqk', q, k,
                        preferred_element_type=jnp.float32)
    scores = scores - jnp.max(scores, axis=-1, keepdims=True)
    e = jnp.exp(scores)
    attn = e * (1.0 / jnp.sum(e, axis=-1, keepdims=True))       # softmax over keys

    ctx = jnp.einsum('bqk,bkd->bqd', attn, v,
                     preferred_element_type=jnp.float32)

    # ---- output projection (OUT == 1): VPU multiply + lane reduction ----------
    out = jnp.sum(ctx * wo_ref[...], axis=-1) + bo_ref[0]        # (BB, T), lane-dense
    o_ref[...] = out.astype(o_ref.dtype)


def _pick_block_batch(B, T):
    # Target ~512 rows (B*T) per grid step: large enough to approach HBM roofline,
    # small enough to be safe for v7x's 64 MiB VMEM with double-buffering.
    target_rows = 512
    bb = max(1, target_rows // max(T, 1))
    if bb >= B:
        return B
    bb = max(8, (bb // 8) * 8)       # keep the batch block 8-aligned for tiling
    return min(bb, B)


def mlp_attention(x, params, seed=0):
    """x: (B, T, INPUT_SIZE) float32 -> (B, T, OUT) float32."""
    B, T, D = x.shape
    assert D == INPUT_SIZE

    # -------- layout plumbing in the wrapper (free) -----------------------------
    # PyTorch (out, in) weights -> (in, out); fuse Q/K/V; fold 1/sqrt(L2) into wq/bq.
    scale = 1.0 / jnp.sqrt(jnp.float32(L2))
    w1_t = params['w1'].T                                        # (D, L1)
    w2_t = params['w2'].T                                        # (L1, L2)
    wqkv = jnp.concatenate([params['wq'].T * scale,
                            params['wk'].T,
                            params['wv'].T], axis=1)             # (L2, 3*L2)
    bqkv = jnp.concatenate([params['bq'] * scale,
                            params['bk'],
                            params['bv']], axis=1)               # (1, 3*L2)
    wo_row = params['wo']                                        # (1, L2)  (OUT == 1)
    bo = params['bo'].reshape(1).astype(jnp.float32)             # scalar via SMEM
    seed_arr = jnp.array([seed], dtype=jnp.int32)

    # -------- batch tiling -------------------------------------------------------
    BB = _pick_block_batch(B, T)
    Bp = pl.cdiv(B, BB) * BB
    xp = x if Bp == B else jnp.pad(x, ((0, Bp - B), (0, 0), (0, 0)))
    nb = Bp // BB

    smem_spec = pl.BlockSpec(memory_space=pltpu.MemorySpace.SMEM)

    in_specs = [
        smem_spec,                                               # seed
        smem_spec,                                               # bo
        pl.BlockSpec((BB, T, D), lambda i: (i, 0, 0)),           # x tile
        pl.BlockSpec((D, L1), lambda i: (0, 0)),                 # w1 (resident)
        pl.BlockSpec((1, L1), lambda i: (0, 0)),                 # b1
        pl.BlockSpec((L1, L2), lambda i: (0, 0)),                # w2
        pl.BlockSpec((1, L2), lambda i: (0, 0)),                 # b2
        pl.BlockSpec((L2, 3 * L2), lambda i: (0, 0)),            # wqkv
        pl.BlockSpec((1, 3 * L2), lambda i: (0, 0)),             # bqkv
        pl.BlockSpec((1, L2), lambda i: (0, 0)),                 # wo row
    ]
    out_spec = pl.BlockSpec((BB, T), lambda i: (i, 0))           # lane-dense (BB, T)

    out = pl.pallas_call(
        mlp_attention_kernel,
        out_shape=jax.ShapeDtypeStruct((Bp, T), jnp.float32),
        grid=(nb,),
        in_specs=in_specs,
        out_specs=out_spec,
        compiler_params=pltpu.CompilerParams(
            dimension_semantics=("parallel",),                   # shard across TCs (v7x)
            vmem_limit_bytes=48 * 1024 * 1024,                   # > 32MiB default, safe on v7x
        ),
    )(seed_arr, bo, xp, w1_t, params['b1'], w2_t, params['b2'],
      wqkv, bqkv, wo_row)

    return out[:B].reshape(B, T, OUT)


def init_params(key):
    """Deterministic PyTorch-style init: uniform(-1/sqrt(fan_in), 1/sqrt(fan_in))."""
    def linear(key, out_f, in_f):
        kw, kb = jax.random.split(key)
        bound = 1.0 / jnp.sqrt(jnp.float32(in_f))
        w = jax.random.uniform(kw, (out_f, in_f), jnp.float32, -bound, bound)
        b = jax.random.uniform(kb, (1, out_f), jnp.float32, -bound, bound)
        return w, b

    keys = jax.random.split(key, 6)
    w1, b1 = linear(keys[0], L1, INPUT_SIZE)
    w2, b2 = linear(keys[1], L2, L1)
    wq, bq = linear(keys[2], L2, L2)
    wk, bk = linear(keys[3], L2, L2)
    wv, bv = linear(keys[4], L2, L2)
    wo, bo = linear(keys[5], OUT, L2)
    return dict(w1=w1, b1=b1, w2=w2, b2=b2,
                wq=wq, bq=bq, wk=wk, bk=bk, wv=wv, bv=bv,
                wo=wo, bo=bo)


if __name__ == "__main__":
    key = jax.random.PRNGKey(0)
    kx, kp = jax.random.split(key)

    B, T = 2, 8                                    # small synthetic shapes
    x = jax.random.normal(kx, (B, T, INPUT_SIZE), dtype=jnp.float32)
    params = init_params(kp)

    out = mlp_attention(x, params, seed=0)
    out = jax.block_until_ready(out)

    assert out.shape == (B, T, OUT), out.shape
    assert bool(jnp.all(jnp.isfinite(out))), "non-finite output"
    print("KERNEL_OK")
</pallas_src>

<mosaic_0001>
module attributes {stable_mosaic.version = 11 : i64} {
  func.func @mlp_attention_kernel(%arg0: i32, %arg1: memref<1xi32, #tpu.memory_space<smem>>, %arg2: memref<1xf32, #tpu.memory_space<smem>>, %arg3: memref<2x8x10xf32, #tpu.memory_space<vmem>>, %arg4: memref<10x32xf32, #tpu.memory_space<vmem>>, %arg5: memref<1x32xf32, #tpu.memory_space<vmem>>, %arg6: memref<32x16xf32, #tpu.memory_space<vmem>>, %arg7: memref<1x16xf32, #tpu.memory_space<vmem>>, %arg8: memref<16x48xf32, #tpu.memory_space<vmem>>, %arg9: memref<1x48xf32, #tpu.memory_space<vmem>>, %arg10: memref<1x16xf32, #tpu.memory_space<vmem>>, %arg11: memref<2x8xf32, #tpu.memory_space<vmem>>) attributes {dimension_semantics = [#tpu.dimension_semantics<parallel>], iteration_bounds = array<i64: 1>, scalar_prefetch = 0 : i64, scratch_operands = 0 : i64, tpu.core_type = #tpu.core_type<tc>, window_params = [{transform_indices = @transform_0, window_bounds = array<i64: 1>}, {transform_indices = @transform_1, window_bounds = array<i64: 1>}, {transform_indices = @transform_2, window_bounds = array<i64: 2, 8, 10>}, {pipeline_mode = #tpu.pipeline_mode<synchronous>, transform_indices = @transform_3, window_bounds = array<i64: 10, 32>}, {pipeline_mode = #tpu.pipeline_mode<synchronous>, transform_indices = @transform_4, window_bounds = array<i64: 1, 32>}, {pipeline_mode = #tpu.pipeline_mode<synchronous>, transform_indices = @transform_5, window_bounds = array<i64: 32, 16>}, {pipeline_mode = #tpu.pipeline_mode<synchronous>, transform_indices = @transform_6, window_bounds = array<i64: 1, 16>}, {pipeline_mode = #tpu.pipeline_mode<synchronous>, transform_indices = @transform_7, window_bounds = array<i64: 16, 48>}, {pipeline_mode = #tpu.pipeline_mode<synchronous>, transform_indices = @transform_8, window_bounds = array<i64: 1, 48>}, {pipeline_mode = #tpu.pipeline_mode<synchronous>, transform_indices = @transform_9, window_bounds = array<i64: 1, 16>}, {transform_indices = @transform_10, window_bounds = array<i64: 2, 8>}]} {
    %c0 = arith.constant 0 : index
    %c0_0 = arith.constant 0 : index
    %c0_1 = arith.constant 0 : index
    %0 = vector.load %arg3[%c0, %c0_0, %c0_1] : memref<2x8x10xf32, #tpu.memory_space<vmem>>, vector<2x8x10xf32>
    %c0_2 = arith.constant 0 : index
    %c0_3 = arith.constant 0 : index
    %1 = vector.load %arg4[%c0_2, %c0_3] : memref<10x32xf32, #tpu.memory_space<vmem>>, vector<10x32xf32>
    "tpu.trace_start"() <{level = 10 : i32, message = "btd,dh->bth"}> : () -> ()
    %cst = arith.constant dense<0.000000e+00> : vector<2x8x32xf32>
    %2 = tpu.matmul %0, %1, %cst {dimension_numbers = #tpu.dot_dimension_numbers<[2], [0], [0, 1], [1], [0, 0, 0, 1, 1, 1], [], []>} : vector<2x8x10xf32>, vector<10x32xf32>, vector<2x8x32xf32> -> vector<2x8x32xf32>
    "tpu.trace_stop"() : () -> ()
    %c0_4 = arith.constant 0 : index
    %c0_5 = arith.constant 0 : index
    %3 = vector.load %arg5[%c0_4, %c0_5] : memref<1x32xf32, #tpu.memory_space<vmem>>, vector<1x32xf32>
    %4 = vector.shape_cast %3 : vector<1x32xf32> to vector<1x1x32xf32>
    %5 = vector.broadcast %4 : vector<1x1x32xf32> to vector<2x8x32xf32>
    %6 = arith.addf %2, %5 : vector<2x8x32xf32>
    %7 = tpu.iota {dimensions = array<i32: 0>} : vector<2x8x32xi32>
    %8 = tpu.iota {dimensions = array<i32: 1>} : vector<2x8x32xi32>
    %9 = tpu.iota {dimensions = array<i32: 2>} : vector<2x8x32xi32>
    %c2_i32 = arith.constant 2 : i32
    %10 = arith.muli %arg0, %c2_i32 : i32
    %11 = vector.broadcast %10 : i32 to vector<2x8x32xi32>
    %12 = arith.addi %11, %7 : vector<2x8x32xi32>
    %c8_i32 = arith.constant 8 : i32
    %13 = vector.broadcast %c8_i32 : i32 to vector<2x8x32xi32>
    %14 = arith.muli %12, %13 : vector<2x8x32xi32>
    %15 = arith.addi %14, %8 : vector<2x8x32xi32>
    %c32_i32 = arith.constant 32 : i32
    %16 = vector.broadcast %c32_i32 : i32 to vector<2x8x32xi32>
    %17 = arith.muli %15, %16 : vector<2x8x32xi32>
    %18 = arith.addi %17, %9 : vector<2x8x32xi32>
    %c0_6 = arith.constant 0 : index
    %19 = memref.load %arg1[%c0_6] : memref<1xi32, #tpu.memory_space<smem>>
    %c-1640531527_i32 = arith.constant -1640531527 : i32
    %20 = arith.muli %19, %c-1640531527_i32 : i32
    %21 = vector.broadcast %20 : i32 to vector<2x8x32xi32>
    %22 = arith.addi %18, %21 : vector<2x8x32xi32>
    %c16_i32 = arith.constant 16 : i32
    %23 = vector.broadcast %c16_i32 : i32 to vector<2x8x32xi32>
    %24 = arith.shrui %22, %23 : vector<2x8x32xi32>
    %25 = arith.xori %22, %24 : vector<2x8x32xi32>
    %c2146121005_i32 = arith.constant 2146121005 : i32
    %26 = vector.broadcast %c2146121005_i32 : i32 to vector<2x8x32xi32>
    %27 = arith.muli %25, %26 : vector<2x8x32xi32>
    %c15_i32 = arith.constant 15 : i32
    %28 = vector.broadcast %c15_i32 : i32 to vector<2x8x32xi32>
    %29 = arith.shrui %27, %28 : vector<2x8x32xi32>
    %30 = arith.xori %27, %29 : vector<2x8x32xi32>
    %c-2073254261_i32 = arith.constant -2073254261 : i32
    %31 = vector.broadcast %c-2073254261_i32 : i32 to vector<2x8x32xi32>
    %32 = arith.muli %30, %31 : vector<2x8x32xi32>
    %c16_i32_7 = arith.constant 16 : i32
    %33 = vector.broadcast %c16_i32_7 : i32 to vector<2x8x32xi32>
    %34 = arith.shrui %32, %33 : vector<2x8x32xi32>
    %35 = arith.xori %32, %34 : vector<2x8x32xi32>
    %c8388607_i32 = arith.constant 8388607 : i32
    %36 = vector.broadcast %c8388607_i32 : i32 to vector<2x8x32xi32>
    %37 = arith.andi %35, %36 : vector<2x8x32xi32>
    %c838860_i32 = arith.constant 838860 : i32
    %38 = vector.broadcast %c838860_i32 : i32 to vector<2x8x32xi32>
    %39 = arith.cmpi uge, %37, %38 : vector<2x8x32xi32>
    %cst_8 = arith.constant 1.11111116 : f32
    %40 = vector.broadcast %cst_8 : f32 to vector<2x8x32xf32>
    %41 = arith.mulf %6, %40 : vector<2x8x32xf32>
    %cst_9 = arith.constant 0.000000e+00 : f32
    %42 = vector.broadcast %cst_9 : f32 to vector<2x8x32xf32>
    %43 = arith.select %39, %41, %42 : vector<2x8x32xi1>, vector<2x8x32xf32>
    %44 = math.tanh %43 : vector<2x8x32xf32>
    %c0_10 = arith.constant 0 : index
    %c0_11 = arith.constant 0 : index
    %45 = vector.load %arg6[%c0_10, %c0_11] : memref<32x16xf32, #tpu.memory_space<vmem>>, vector<32x16xf32>
    "tpu.trace_start"() <{level = 10 : i32, message = "bth,hk->btk"}> : () -> ()
    %cst_12 = arith.constant dense<0.000000e+00> : vector<2x8x16xf32>
    %46 = tpu.matmul %44, %45, %cst_12 {dimension_numbers = #tpu.dot_dimension_numbers<[2], [0], [0, 1], [1], [0, 0, 0, 1, 1, 1], [], []>} : vector<2x8x32xf32>, vector<32x16xf32>, vector<2x8x16xf32> -> vector<2x8x16xf32>
    "tpu.trace_stop"() : () -> ()
    %c0_13 = arith.constant 0 : index
    %c0_14 = arith.constant 0 : index
    %47 = vector.load %arg7[%c0_13, %c0_14] : memref<1x16xf32, #tpu.memory_space<vmem>>, vector<1x16xf32>
    %48 = vector.shape_cast %47 : vector<1x16xf32> to vector<1x1x16xf32>
    %49 = vector.broadcast %48 : vector<1x1x16xf32> to vector<2x8x16xf32>
    %50 = arith.addf %46, %49 : vector<2x8x16xf32>
    %51 = math.tanh %50 : vector<2x8x16xf32>
    %c0_15 = arith.constant 0 : index
    %c0_16 = arith.constant 0 : index
    %52 = vector.load %arg8[%c0_15, %c0_16] : memref<16x48xf32, #tpu.memory_space<vmem>>, vector<16x48xf32>
    "tpu.trace_start"() <{level = 10 : i32, message = "btk,kf->btf"}> : () -> ()
    %cst_17 = arith.constant dense<0.000000e+00> : vector<2x8x48xf32>
    %53 = tpu.matmul %51, %52, %cst_17 {dimension_numbers = #tpu.dot_dimension_numbers<[2], [0], [0, 1], [1], [0, 0, 0, 1, 1, 1], [], []>} : vector<2x8x16xf32>, vector<16x48xf32>, vector<2x8x48xf32> -> vector<2x8x48xf32>
    "tpu.trace_stop"() : () -> ()
    %c0_18 = arith.constant 0 : index
    %c0_19 = arith.constant 0 : index
    %54 = vector.load %arg9[%c0_18, %c0_19] : memref<1x48xf32, #tpu.memory_space<vmem>>, vector<1x48xf32>
    %55 = vector.shape_cast %54 : vector<1x48xf32> to vector<1x1x48xf32>
    %56 = vector.broadcast %55 : vector<1x1x48xf32> to vector<2x8x48xf32>
    %57 = arith.addf %53, %56 : vector<2x8x48xf32>
    %58 = vector.extract_strided_slice %57 {offsets = [0, 0, 0], sizes = [2, 8, 16], strides = [1, 1, 1]} : vector<2x8x48xf32> to vector<2x8x16xf32>
    %59 = vector.extract_strided_slice %57 {offsets = [0, 0, 16], sizes = [2, 8, 16], strides = [1, 1, 1]} : vector<2x8x48xf32> to vector<2x8x16xf32>
    %60 = vector.extract_strided_slice %57 {offsets = [0, 0, 32], sizes = [2, 8, 16], strides = [1, 1, 1]} : vector<2x8x48xf32> to vector<2x8x16xf32>
    "tpu.trace_start"() <{level = 10 : i32, message = "bqd,bkd->bqk"}> : () -> ()
    %cst_20 = arith.constant dense<0.000000e+00> : vector<2x8x8xf32>
    %61 = tpu.matmul %58, %59, %cst_20 {dimension_numbers = #tpu.dot_dimension_numbers<[2], [2], [1], [1], [0, 0, 0, 1, 1, 1], [0], [0]>} : vector<2x8x16xf32>, vector<2x8x16xf32>, vector<2x8x8xf32> -> vector<2x8x8xf32>
    "tpu.trace_stop"() : () -> ()
    %cst_21 = arith.constant dense<0xFF800000> : vector<2x8xf32>
    %62 = vector.multi_reduction <maximumf>, %61, %cst_21 [2] : vector<2x8x8xf32> to vector<2x8xf32>
    %63 = vector.shape_cast %62 : vector<2x8xf32> to vector<2x8x1xf32>
    %64 = vector.broadcast %63 : vector<2x8x1xf32> to vector<2x8x8xf32>
    %65 = arith.subf %61, %64 : vector<2x8x8xf32>
    %66 = math.exp %65 : vector<2x8x8xf32>
    %cst_22 = arith.constant dense<0.000000e+00> : vector<2x8xf32>
    %67 = vector.multi_reduction <add>, %66, %cst_22 [2] : vector<2x8x8xf32> to vector<2x8xf32>
    %68 = vector.shape_cast %67 : vector<2x8xf32> to vector<2x8x1xf32>
    %cst_23 = arith.constant 1.000000e+00 : f32
    %69 = vector.broadcast %cst_23 : f32 to vector<2x8x1xf32>
    %70 = arith.divf %69, %68 : vector<2x8x1xf32>
    %71 = vector.broadcast %70 : vector<2x8x1xf32> to vector<2x8x8xf32>
    %72 = arith.mulf %66, %71 : vector<2x8x8xf32>
    "tpu.trace_start"() <{level = 10 : i32, message = "bqk,bkd->bqd"}> : () -> ()
    %cst_24 = arith.constant dense<0.000000e+00> : vector<2x8x16xf32>
    %73 = tpu.matmul %72, %60, %cst_24 {dimension_numbers = #tpu.dot_dimension_numbers<[2], [1], [1], [2], [0, 0, 0, 1, 1, 2], [0], [0]>} : vector<2x8x8xf32>, vector<2x8x16xf32>, vector<2x8x16xf32> -> vector<2x8x16xf32>
    "tpu.trace_stop"() : () -> ()
    %c0_25 = arith.constant 0 : index
    %c0_26 = arith.constant 0 : index
    %74 = vector.load %arg10[%c0_25, %c0_26] : memref<1x16xf32, #tpu.memory_space<vmem>>, vector<1x16xf32>
    %75 = vector.shape_cast %74 : vector<1x16xf32> to vector<1x1x16xf32>
    %76 = vector.broadcast %75 : vector<1x1x16xf32> to vector<2x8x16xf32>
    %77 = arith.mulf %73, %76 : vector<2x8x16xf32>
    %cst_27 = arith.constant dense<0.000000e+00> : vector<2x8xf32>
    %78 = vector.multi_reduction <add>, %77, %cst_27 [2] : vector<2x8x16xf32> to vector<2x8xf32>
    %c0_28 = arith.constant 0 : index
    %79 = memref.load %arg2[%c0_28] : memref<1xf32, #tpu.memory_space<smem>>
    %80 = vector.broadcast %79 : f32 to vector<2x8xf32>
    %81 = arith.addf %78, %80 : vector<2x8xf32>
    %c0_29 = arith.constant 0 : index
    %c0_30 = arith.constant 0 : index
    %82 = vector.load %arg11[%c0_29, %c0_30] : memref<2x8xf32, #tpu.memory_space<vmem>>, vector<2x8xf32>
    tpu.vector_store %arg11[%c0_29, %c0_30], %81 {strides = array<i32>} : memref<2x8xf32, #tpu.memory_space<vmem>>, vector<2x8xf32>,
    return
  }
  func.func @transform_0(%arg0: i32) -> i32 {
    %c0_i32 = arith.constant 0 : i32
    %c0_i32_0 = arith.constant 0 : i32
    return %c0_i32 : i32
  }
  func.func @transform_1(%arg0: i32) -> i32 {
    %c0_i32 = arith.constant 0 : i32
    %c0_i32_0 = arith.constant 0 : i32
    return %c0_i32 : i32
  }
  func.func @transform_2(%arg0: i32) -> (i32, i32, i32) {
    %c0_i32 = arith.constant 0 : i32
    %c0_i32_0 = arith.constant 0 : i32
    %c0_i32_1 = arith.constant 0 : i32
    return %arg0, %c0_i32, %c0_i32_0 : i32, i32, i32
  }
  func.func @transform_3(%arg0: i32) -> (i32, i32) {
    %c0_i32 = arith.constant 0 : i32
    %c0_i32_0 = arith.constant 0 : i32
    %c0_i32_1 = arith.constant 0 : i32
    return %c0_i32, %c0_i32_0 : i32, i32
  }
  func.func @transform_4(%arg0: i32) -> (i32, i32) {
    %c0_i32 = arith.constant 0 : i32
    %c0_i32_0 = arith.constant 0 : i32
    %c0_i32_1 = arith.constant 0 : i32
    return %c0_i32, %c0_i32_0 : i32, i32
  }
  func.func @transform_5(%arg0: i32) -> (i32, i32) {
    %c0_i32 = arith.constant 0 : i32
    %c0_i32_0 = arith.constant 0 : i32
    %c0_i32_1 = arith.constant 0 : i32
    return %c0_i32, %c0_i32_0 : i32, i32
  }
  func.func @transform_6(%arg0: i32) -> (i32, i32) {
    %c0_i32 = arith.constant 0 : i32
    %c0_i32_0 = arith.constant 0 : i32
    %c0_i32_1 = arith.constant 0 : i32
    return %c0_i32, %c0_i32_0 : i32, i32
  }
  func.func @transform_7(%arg0: i32) -> (i32, i32) {
    %c0_i32 = arith.constant 0 : i32
    %c0_i32_0 = arith.constant 0 : i32
    %c0_i32_1 = arith.constant 0 : i32
    return %c0_i32, %c0_i32_0 : i32, i32
  }
  func.func @transform_8(%arg0: i32) -> (i32, i32) {
    %c0_i32 = arith.constant 0 : i32
    %c0_i32_0 = arith.constant 0 : i32
    %c0_i32_1 = arith.constant 0 : i32
    return %c0_i32, %c0_i32_0 : i32, i32
  }
  func.func @transform_9(%arg0: i32) -> (i32, i32) {
    %c0_i32 = arith.constant 0 : i32
    %c0_i32_0 = arith.constant 0 : i32
    %c0_i32_1 = arith.constant 0 : i32
    return %c0_i32, %c0_i32_0 : i32, i32
  }
  func.func @transform_10(%arg0: i32) -> (i32, i32) {
    %c0_i32 = arith.constant 0 : i32
    %c0_i32_0 = arith.constant 0 : i32
    return %arg0, %c0_i32 : i32, i32
  }
}

</mosaic_0001>

<llo_original>
// kernel: tpu_custom_call.1
$region0: #{tpu_custom_call.1}
  #allocation0 [shape = 'u32[]', space=smem, size = 0x4, offset = 0x4, fixed_abs, tag = 'smem constant byte address 0x4 - core index']
  #allocation1 [shape = 'u32[144,128]{1,0:T(1,128)}', space=vmem, size = 0x12000, scoped, tag = 'internal scratch']
  #allocation2 [shape = 's32[1]{0:T(128)S(6)}', space=smem, size = 0x200, scoped, tag = 'scoped memory for tpu_custom_call.1']
  #allocation3 [shape = 'f32[1]{0:T(128)S(6)}', space=smem, size = 0x200, scoped, tag = 'scoped memory for tpu_custom_call.1']
  %s0 = inlined_call_operand.<no memory space> [shape: s32[1], index: 0, kind: input, shape index: {}]
  %s1 = inlined_call_operand.<no memory space> [shape: f32[1], index: 1, kind: input, shape index: {}]
  %s2 = inlined_call_operand.vmem [shape: f32[2,8,10], index: 2, kind: input, shape index: {}]
  %s3 = inlined_call_operand.vmem [shape: f32[10,32], index: 3, kind: input, shape index: {}]
  %s4 = inlined_call_operand.vmem [shape: f32[1,32], index: 4, kind: input, shape index: {}]
  %s5 = inlined_call_operand.vmem [shape: f32[32,16], index: 5, kind: input, shape index: {}]
  %s6 = inlined_call_operand.vmem [shape: f32[1,16], index: 6, kind: input, shape index: {}]
  %s7 = inlined_call_operand.vmem [shape: f32[16,48], index: 7, kind: input, shape index: {}]
  %s8 = inlined_call_operand.vmem [shape: f32[1,48], index: 8, kind: input, shape index: {}]
  %s9 = inlined_call_operand.vmem [shape: f32[1,16], index: 9, kind: input, shape index: {}]
  %s10 = inlined_call_operand.hbm [shape: f32[2,8], index: 10, kind: output, shape index: {}]
  %s11 = sld [smem:[#allocation0]]
  $region50: #{tpu_custom_call.1} parent=0
    _
  %s13 = ssub.s32 1, %s11
  %s14 = scalar_select 0, %s13, %s11
  %15 = sst [smem:[#allocation2]] %s0
  %16 = sst [smem:[#allocation3]] %s1
  $region1: #{tpu_custom_call.1} parent=0
    #allocation4 [shape = 'u8[1024]{0}', space=vmem, size = 0x400, scoped, tag = 'output window, operand 0, single buffered']
    #allocation5 [shape = 's32[1]{0}', space=sflag, size = 0x4, scoped, tag = 'scoped memory for tpu_custom_call.1']
    %17 = vsyncpa [#allocation5], 0
    // Predicated region
    $region2: #{tpu_custom_call.1} parent=1 // pred_check
      _
    $region3: #{tpu_custom_call.1} parent=1 // pred_check_branch
      %19 = sbr.rel (0) target = $region5
    $region4: #{tpu_custom_call.1} parent=1 // pred_region
      _
    $region5: #{tpu_custom_call.1} parent=1 // pred_fallthru
      _
    // Predicated region
    $region6: #{tpu_custom_call.1} parent=1 // pred_check
      _
    $region7: #{tpu_custom_call.1} parent=1 // pred_check_branch
      %21 = sbr.rel (0) target = $region9
    $region8: #{tpu_custom_call.1} parent=1 // pred_region
      _
    $region9: #{tpu_custom_call.1} parent=1 // pred_fallthru
      _
    // Predicated region
    $region10: #{tpu_custom_call.1} parent=1 // pred_check
      _
    $region11: #{tpu_custom_call.1} parent=1 // pred_check_branch
      %23 = sbr.rel (0) target = $region13
    $region12: #{tpu_custom_call.1} parent=1 // pred_region
      _
    $region13: #{tpu_custom_call.1} parent=1 // pred_fallthru
      _
    // Predicated region
    $region14: #{tpu_custom_call.1} parent=1 // pred_check
      _
    $region15: #{tpu_custom_call.1} parent=1 // pred_check_branch
      %25 = sbr.rel (0) target = $region17
    $region16: #{tpu_custom_call.1} parent=1 // pred_region
      _
    $region17: #{tpu_custom_call.1} parent=1 // pred_fallthru
      _
    // Predicated region
    $region18: #{tpu_custom_call.1} parent=1 // pred_check
      _
    $region19: #{tpu_custom_call.1} parent=1 // pred_check_branch
      %27 = sbr.rel (0) target = $region21
    $region20: #{tpu_custom_call.1} parent=1 // pred_region
      _
    $region21: #{tpu_custom_call.1} parent=1 // pred_fallthru
      _
    // Predicated region
    $region22: #{tpu_custom_call.1} parent=1 // pred_check
      _
    $region23: #{tpu_custom_call.1} parent=1 // pred_check_branch
      %29 = sbr.rel (0) target = $region25
    $region24: #{tpu_custom_call.1} parent=1 // pred_region
      _
    $region25: #{tpu_custom_call.1} parent=1 // pred_fallthru
      _
    // Predicated region
    $region26: #{tpu_custom_call.1} parent=1 // pred_check
      _
    $region27: #{tpu_custom_call.1} parent=1 // pred_check_branch
      %31 = sbr.rel (0) target = $region29
    $region28: #{tpu_custom_call.1} parent=1 // pred_region
      _
    $region29: #{tpu_custom_call.1} parent=1 // pred_fallthru
      _
    // Predicated region
    $region30: #{tpu_custom_call.1} parent=1 // pred_check
      _
    $region31: #{tpu_custom_call.1} parent=1 // pred_check_branch
      %33 = sbr.rel (0) target = $region33
    $region32: #{tpu_custom_call.1} parent=1 // pred_region
      _
    $region33: #{tpu_custom_call.1} parent=1 // pred_fallthru
      _
    // Predicated region
    $region34: #{tpu_custom_call.1} parent=1 // pred_check
      _
    $region35: #{tpu_custom_call.1} parent=1 // pred_check_branch
      %35 = sbr.rel (0) target = $region37
    $region36: #{tpu_custom_call.1} parent=1 // pred_region
      _
    $region37: #{tpu_custom_call.1} parent=1 // pred_fallthru
      _
    // Predicated region
    $region38: #{tpu_custom_call.1} parent=1 // pred_check
      _
    $region39: #{tpu_custom_call.1} parent=1 // pred_check_branch
      %37 = sbr.rel (0) target = $region41
    $region40: #{tpu_custom_call.1} parent=1 // pred_region
      _
    $region41: #{tpu_custom_call.1} parent=1 // pred_fallthru
      _
    %v38 = vld [vmem:[%s2] sm:$0xff]
    %v39 = vld [vmem:[%s2 + $0x8] sm:$0xff]
    %v40 = vld [vmem:[%s3] sm:$0xff]
    %v41 = vld [vmem:[%s3 + $0x8] sm:$0x3]
    %v42 = vld [vmem:[%s4] sm:$0x1]
    %v44 = vlaneseq
    %v45 = vshrl.u32 %v44, 7
    %v46 = vsub.s32 0, %v45
    %v47 = vrot.slane %v42, %v46
    %vm49 = vcmask 80896
    %v51 = vsel %vm49, %v38, 0
    %v54 = vsel %vm49, %v39, 0
    %vm56 = vcmask 1041408
    %v58 = vsel %vm56, %v41, 0
    %60 = vmatprep.subr.mxu0 0.0
    %61 = vmatpush1.msra.mxu0 %v40
    %62 = vmatprep.subr.mxu0 0.0
    %63 = vmatpush1.msra.mxu0 %v58
    %64 = vmatprep.subr.mxu0 0.0
    %65 = vmatpush1.msra.mxu0 0.0
    %66 = vmatprep.subr.mxu0 0.0
    %67 = vmatpush1.msra.mxu0 0.0
    %68 = vmatprep.subr.mxu0 0.0
    %69 = vmatpush1.msra.mxu0 0.0
    %70 = vmatprep.subr.mxu0 0.0
    %71 = vmatpush1.msra.mxu0 0.0
    %72 = vmatprep.subr.mxu0 0.0
    %73 = vmatpush1.msra.mxu0 0.0
    %74 = vmatprep.subr.mxu0 0.0
    %75 = vmatpush1.msra.mxu0 0.0
    %76 = vmatprep.subr.mxu0 0.0
    %77 = vmatpush1.msra.mxu0 0.0
    %78 = vmatprep.subr.mxu0 0.0
    %79 = vmatpush1.msra.mxu0 0.0
    %80 = vmatprep.subr.mxu0 0.0
    %81 = vmatpush1.msra.mxu0 0.0
    %82 = vmatprep.subr.mxu0 0.0
    %83 = vmatpush1.msra.mxu0 0.0
    %84 = vmatprep.subr.mxu0 0.0
    %85 = vmatpush1.msra.mxu0 0.0
    %86 = vmatprep.subr.mxu0 0.0
    %87 = vmatpush1.msra.mxu0 0.0
    %88 = vmatprep.subr.mxu0 0.0
    %89 = vmatpush1.msra.mxu0 0.0
    %90 = vmatprep.subr.mxu0 0.0
    %91 = vmatpush1.msra.mxu0 0.0
    %92 = vmatprep.subr.mxu0 0.0
    %93 = vmatpush1.msra.mxu0 0.0
    %94 = vmatprep.subr.mxu0 0.0
    %95 = vmatpush1.msra.mxu0 0.0
    %96 = vmatprep.subr.mxu0 0.0
    %97 = vmatpush1.msra.mxu0 0.0
    %98 = vmatprep.subr.mxu0 0.0
    %99 = vmatpush1.msra.mxu0 0.0
    %100 = vmatprep.subr.mxu0 0.0
    %101 = vmatpush1.msra.mxu0 0.0
    %102 = vmatprep.subr.mxu0 0.0
    %103 = vmatpush1.msra.mxu0 0.0
    %104 = vmatprep.subr.mxu0 0.0
    %105 = vmatpush1.msra.mxu0 0.0
    %106 = vmatprep.subr.mxu0 0.0
    %107 = vmatpush1.msra.mxu0 0.0
    %108 = vmatprep.subr.mxu0 0.0
    %109 = vmatpush1.msra.mxu0 0.0
    %110 = vmatprep.subr.mxu0 0.0
    %111 = vmatpush1.msra.mxu0 0.0
    %112 = vmatprep.subr.mxu0 0.0
    %113 = vmatpush1.msra.mxu0 0.0
    %114 = vmatprep.subr.mxu0 0.0
    %115 = vmatpush1.msra.mxu0 0.0
    %116 = vmatprep.subr.mxu0 0.0
    %117 = vmatpush1.msra.mxu0 0.0
    %118 = vmatprep.subr.mxu0 0.0
    %119 = vmatpush1.msra.mxu0 0.0
    %120 = vmatprep.subr.mxu0 0.0
    %121 = vmatpush1.msra.mxu0 0.0
    %122 = vmatprep.subr.mxu0 0.0
    %123 = vmatpush1.msra.mxu0 0.0
    %124 = vmatprep.mubr.f32.mxu0 0.0
    %125 = vmatmul.mubr.f32.gmra.mrb[0].mxu0 %v51
    %v126 = vpop.f32.mrb[0].mxu0
    %v127 = vadd.f32 %v47, %v126
    %v128 = vpop.f32.mrb[0].mxu0
    %129 = vmatprep.mubr.f32.mxu0 0.0
    %130 = vmatmul.mubr.f32.gmra.mrb[0].mxu0 %v54
    %v131 = vpop.f32.mrb[0].mxu0
    %v132 = vadd.f32 %v47, %v131
    %v133 = vpop.f32.mrb[0].mxu0
    %134 = vdwg.mxu0
    %v135 = vlaneseq
    %v136 = vshrl.u32 %v135, 7
    %v137 = vlaneseq
    %v138 = vand.u32 %v137, 127
    %s139 = smul.u32 0, 2
    %v140 = vstv %s139
    %v141 = vadd.s32 %v140, 1
    %v142 = vmul.u32 %v140, 8
    %v143 = vmul.u32 %v141, 8
    %v144 = vadd.s32 %v142, %v136
    %v145 = vadd.s32 %v143, %v136
    %v146 = vmul.u32 %v144, 32
    %v147 = vmul.u32 %v145, 32
    %v148 = vadd.s32 %v146, %v138
    %v149 = vadd.s32 %v147, %v138
    %s150 = sld [smem:[#allocation2]]
    %s151 = smul.u32 %s150, 2654435769
    %v152 = vstv %s151
    %v153 = vadd.s32 %v148, %v152
    %v154 = vadd.s32 %v149, %v152
    %v155 = vshrl.u32 %v153, 16
    %v156 = vshrl.u32 %v154, 16
    %v157 = vxor.u32 %v153, %v155
    %v158 = vxor.u32 %v154, %v156
    %v159 = vmul.u32 %v157, 2146121005
    %v160 = vmul.u32 %v158, 2146121005
    %v161 = vshrl.u32 %v159, 15
    %v162 = vshrl.u32 %v160, 15
    %v163 = vxor.u32 %v159, %v161
    %v164 = vxor.u32 %v160, %v162
    %v165 = vmul.u32 %v163, 2221713035
    %v166 = vmul.u32 %v164, 2221713035
    %v167 = vshrl.u32 %v165, 16
    %v168 = vshrl.u32 %v166, 16
    %v169 = vxor.u32 %v165, %v167
    %v170 = vxor.u32 %v166, %v168
    %v171 = vand.u32 %v169, 8388607
    %v172 = vand.u32 %v170, 8388607
    %vm173 = vcmp.ge.u32.totalorder %v171, 838860
    %vm174 = vcmp.ge.u32.totalorder %v172, 838860
    %v175 = vmul.f32 %v127, 1.1111112
    %v176 = vmul.f32 %v132, 1.1111112
    %v177 = vsel %vm173, %v175, 0.0
    %v178 = vsel %vm174, %v176, 0.0
    %v179 = vtanh.pop %v177
    %v180 = vtanh.pop %v178
    %v181 = vld [vmem:[%s5] sm:$0xff]
    %v182 = vld [vmem:[%s5 + $0x8] sm:$0xff]
    %v183 = vld [vmem:[%s5 + $0x10] sm:$0xff]
    %v184 = vld [vmem:[%s5 + $0x18] sm:$0xff]
    %v185 = vld [vmem:[%s6] sm:$0x1]
    %v187 = vlaneseq
    %v188 = vshrl.u32 %v187, 7
    %v189 = vsub.s32 0, %v188
    %v190 = vrot.slane %v185, %v189
    %vm192 = vcmask 261120
    %v194 = vsel %vm192, %v179, 0
    %v197 = vsel %vm192, %v180, 0
    %199 = vmatprep.subr.mxu0 0.0
    %200 = vmatpush1.msra.mxu0 %v181
    %201 = vmatprep.subr.mxu0 0.0
    %202 = vmatpush1.msra.mxu0 %v182
    %203 = vmatprep.subr.mxu0 0.0
    %204 = vmatpush1.msra.mxu0 %v183
    %205 = vmatprep.subr.mxu0 0.0
    %206 = vmatpush1.msra.mxu0 %v184
    %207 = vmatprep.subr.mxu0 0.0
    %208 = vmatpush1.msra.mxu0 0.0
    %209 = vmatprep.subr.mxu0 0.0
    %210 = vmatpush1.msra.mxu0 0.0
    %211 = vmatprep.subr.mxu0 0.0
    %212 = vmatpush1.msra.mxu0 0.0
    %213 = vmatprep.subr.mxu0 0.0
    %214 = vmatpush1.msra.mxu0 0.0
    %215 = vmatprep.subr.mxu0 0.0
    %216 = vmatpush1.msra.mxu0 0.0
    %217 = vmatprep.subr.mxu0 0.0
    %218 = vmatpush1.msra.mxu0 0.0
    %219 = vmatprep.subr.mxu0 0.0
    %220 = vmatpush1.msra.mxu0 0.0
    %221 = vmatprep.subr.mxu0 0.0
    %222 = vmatpush1.msra.mxu0 0.0
    %223 = vmatprep.subr.mxu0 0.0
    %224 = vmatpush1.msra.mxu0 0.0
    %225 = vmatprep.subr.mxu0 0.0
    %226 = vmatpush1.msra.mxu0 0.0
    %227 = vmatprep.subr.mxu0 0.0
    %228 = vmatpush1.msra.mxu0 0.0
    %229 = vmatprep.subr.mxu0 0.0
    %230 = vmatpush1.msra.mxu0 0.0
    %231 = vmatprep.subr.mxu0 0.0
    %232 = vmatpush1.msra.mxu0 0.0
    %233 = vmatprep.subr.mxu0 0.0
    %234 = vmatpush1.msra.mxu0 0.0
    %235 = vmatprep.subr.mxu0 0.0
    %236 = vmatpush1.msra.mxu0 0.0
    %237 = vmatprep.subr.mxu0 0.0
    %238 = vmatpush1.msra.mxu0 0.0
    %239 = vmatprep.subr.mxu0 0.0
    %240 = vmatpush1.msra.mxu0 0.0
    %241 = vmatprep.subr.mxu0 0.0
    %242 = vmatpush1.msra.mxu0 0.0
    %243 = vmatprep.subr.mxu0 0.0
    %244 = vmatpush1.msra.mxu0 0.0
    %245 = vmatprep.subr.mxu0 0.0
    %246 = vmatpush1.msra.mxu0 0.0
    %247 = vmatprep.subr.mxu0 0.0
    %248 = vmatpush1.msra.mxu0 0.0
    %249 = vmatprep.subr.mxu0 0.0
    %250 = vmatpush1.msra.mxu0 0.0
    %251 = vmatprep.subr.mxu0 0.0
    %252 = vmatpush1.msra.mxu0 0.0
    %253 = vmatprep.subr.mxu0 0.0
    %254 = vmatpush1.msra.mxu0 0.0
    %255 = vmatprep.subr.mxu0 0.0
    %256 = vmatpush1.msra.mxu0 0.0
    %257 = vmatprep.subr.mxu0 0.0
    %258 = vmatpush1.msra.mxu0 0.0
    %259 = vmatprep.subr.mxu0 0.0
    %260 = vmatpush1.msra.mxu0 0.0
    %261 = vmatprep.subr.mxu0 0.0
    %262 = vmatpush1.msra.mxu0 0.0
    %263 = vmatprep.mubr.f32.mxu0 0.0
    %264 = vmatmul.mubr.f32.gmra.mrb[0].mxu0 %v194
    %v265 = vpop.f32.mrb[0].mxu0
    %v266 = vadd.f32 %v190, %v265
    %v267 = vpop.f32.mrb[0].mxu0
    %268 = vmatprep.mubr.f32.mxu0 0.0
    %269 = vmatmul.mubr.f32.gmra.mrb[0].mxu0 %v197
    %v270 = vpop.f32.mrb[0].mxu0
    %v271 = vadd.f32 %v190, %v270
    %v272 = vpop.f32.mrb[0].mxu0
    %273 = vdwg.mxu0
    %v274 = vtanh.pop %v266
    %v275 = vtanh.pop %v271
    %v276 = vld [vmem:[%s7] sm:$0xff]
    %v277 = vld [vmem:[%s7 + $0x8] sm:$0xff]
    %v278 = vld [vmem:[%s8] sm:$0x1]
    %v280 = vlaneseq
    %v281 = vshrl.u32 %v280, 7
    %v282 = vsub.s32 0, %v281
    %v283 = vrot.slane %v278, %v282
    %vm285 = vcmask 130048
    %v287 = vsel %vm285, %v274, 0
    %v290 = vsel %vm285, %v275, 0
    %292 = vmatprep.subr.mxu0 0.0
    %293 = vmatpush1.msra.mxu0 %v276
    %294 = vmatprep.subr.mxu0 0.0
    %295 = vmatpush1.msra.mxu0 %v277
    %296 = vmatprep.subr.mxu0 0.0
    %297 = vmatpush1.msra.mxu0 0.0
    %298 = vmatprep.subr.mxu0 0.0
    %299 = vmatpush1.msra.mxu0 0.0
    %300 = vmatprep.subr.mxu0 0.0
    %301 = vmatpush1.msra.mxu0 0.0
    %302 = vmatprep.subr.mxu0 0.0
    %303 = vmatpush1.msra.mxu0 0.0
    %304 = vmatprep.subr.mxu0 0.0
    %305 = vmatpush1.msra.mxu0 0.0
    %306 = vmatprep.subr.mxu0 0.0
    %307 = vmatpush1.msra.mxu0 0.0
    %308 = vmatprep.subr.mxu0 0.0
    %309 = vmatpush1.msra.mxu0 0.0
    %310 = vmatprep.subr.mxu0 0.0
    %311 = vmatpush1.msra.mxu0 0.0
    %312 = vmatprep.subr.mxu0 0.0
    %313 = vmatpush1.msra.mxu0 0.0
    %314 = vmatprep.subr.mxu0 0.0
    %315 = vmatpush1.msra.mxu0 0.0
    %316 = vmatprep.subr.mxu0 0.0
    %317 = vmatpush1.msra.mxu0 0.0
    %318 = vmatprep.subr.mxu0 0.0
    %319 = vmatpush1.msra.mxu0 0.0
    %320 = vmatprep.subr.mxu0 0.0
    %321 = vmatpush1.msra.mxu0 0.0
    %322 = vmatprep.subr.mxu0 0.0
    %323 = vmatpush1.msra.mxu0 0.0
    %324 = vmatprep.subr.mxu0 0.0
    %325 = vmatpush1.msra.mxu0 0.0
    %326 = vmatprep.subr.mxu0 0.0
    %327 = vmatpush1.msra.mxu0 0.0
    %328 = vmatprep.subr.mxu0 0.0
    %329 = vmatpush1.msra.mxu0 0.0
    %330 = vmatprep.subr.mxu0 0.0
    %331 = vmatpush1.msra.mxu0 0.0
    %332 = vmatprep.subr.mxu0 0.0
    %333 = vmatpush1.msra.mxu0 0.0
    %334 = vmatprep.subr.mxu0 0.0
    %335 = vmatpush1.msra.mxu0 0.0
    %336 = vmatprep.subr.mxu0 0.0
    %337 = vmatpush1.msra.mxu0 0.0
    %338 = vmatprep.subr.mxu0 0.0
    %339 = vmatpush1.msra.mxu0 0.0
    %340 = vmatprep.subr.mxu0 0.0
    %341 = vmatpush1.msra.mxu0 0.0
    %342 = vmatprep.subr.mxu0 0.0
    %343 = vmatpush1.msra.mxu0 0.0
    %344 = vmatprep.subr.mxu0 0.0
    %345 = vmatpush1.msra.mxu0 0.0
    %346 = vmatprep.subr.mxu0 0.0
    %347 = vmatpush1.msra.mxu0 0.0
    %348 = vmatprep.subr.mxu0 0.0
    %349 = vmatpush1.msra.mxu0 0.0
    %350 = vmatprep.subr.mxu0 0.0
    %351 = vmatpush1.msra.mxu0 0.0
    %352 = vmatprep.subr.mxu0 0.0
    %353 = vmatpush1.msra.mxu0 0.0
    %354 = vmatprep.subr.mxu0 0.0
    %355 = vmatpush1.msra.mxu0 0.0
    %356 = vmatprep.mubr.f32.mxu0 0.0
    %357 = vmatmul.mubr.f32.gmra.mrb[0].mxu0 %v287
    %v358 = vpop.f32.mrb[0].mxu0
    %v359 = vadd.f32 %v283, %v358
    %v360 = vpop.f32.mrb[0].mxu0
    %361 = vmatprep.mubr.f32.mxu0 0.0
    %362 = vmatmul.mubr.f32.gmra.mrb[0].mxu0 %v290
    %v363 = vpop.f32.mrb[0].mxu0
    %v364 = vadd.f32 %v283, %v363
    %v365 = vpop.f32.mrb[0].mxu0
    %366 = vdwg.mxu0
    %368 = vrot.lane.b32.xlu0 %v359, 112
    %v369 = vpop.permute.xlu0 %368
    %v370 = vsel %vm285, %v359, 0
    %v372 = vsel %vm285, %v369, 0
    %374 = vmatprep.subr.mxu0 0.0
    %375 = vmatpush1.xpose.msra.mxu0 %v372
    %376 = vmatprep.subr.mxu0 0.0
    %377 = vmatpush1.xpose.msra.mxu0 0.0
    %378 = vmatprep.subr.mxu0 0.0
    %379 = vmatpush1.xpose.msra.mxu0 0.0
    %380 = vmatprep.subr.mxu0 0.0
    %381 = vmatpush1.xpose.msra.mxu0 0.0
    %382 = vmatprep.subr.mxu0 0.0
    %383 = vmatpush1.xpose.msra.mxu0 0.0
    %384 = vmatprep.subr.mxu0 0.0
    %385 = vmatpush1.xpose.msra.mxu0 0.0
    %386 = vmatprep.subr.mxu0 0.0
    %387 = vmatpush1.xpose.msra.mxu0 0.0
    %388 = vmatprep.subr.mxu0 0.0
    %389 = vmatpush1.xpose.msra.mxu0 0.0
    %390 = vmatprep.subr.mxu0 0.0
    %391 = vmatpush1.xpose.msra.mxu0 0.0
    %392 = vmatprep.subr.mxu0 0.0
    %393 = vmatpush1.xpose.msra.mxu0 0.0
    %394 = vmatprep.subr.mxu0 0.0
    %395 = vmatpush1.xpose.msra.mxu0 0.0
    %396 = vmatprep.subr.mxu0 0.0
    %397 = vmatpush1.xpose.msra.mxu0 0.0
    %398 = vmatprep.subr.mxu0 0.0
    %399 = vmatpush1.xpose.msra.mxu0 0.0
    %400 = vmatprep.subr.mxu0 0.0
    %401 = vmatpush1.xpose.msra.mxu0 0.0
    %402 = vmatprep.subr.mxu0 0.0
    %403 = vmatpush1.xpose.msra.mxu0 0.0
    %404 = vmatprep.subr.mxu0 0.0
    %405 = vmatpush1.xpose.msra.mxu0 0.0
    %406 = vmatprep.subr.mxu0 0.0
    %407 = vmatpush1.xpose.msra.mxu0 0.0
    %408 = vmatprep.subr.mxu0 0.0
    %409 = vmatpush1.xpose.msra.mxu0 0.0
    %410 = vmatprep.subr.mxu0 0.0
    %411 = vmatpush1.xpose.msra.mxu0 0.0
    %412 = vmatprep.subr.mxu0 0.0
    %413 = vmatpush1.xpose.msra.mxu0 0.0
    %414 = vmatprep.subr.mxu0 0.0
    %415 = vmatpush1.xpose.msra.mxu0 0.0
    %416 = vmatprep.subr.mxu0 0.0
    %417 = vmatpush1.xpose.msra.mxu0 0.0
    %418 = vmatprep.subr.mxu0 0.0
    %419 = vmatpush1.xpose.msra.mxu0 0.0
    %420 = vmatprep.subr.mxu0 0.0
    %421 = vmatpush1.xpose.msra.mxu0 0.0
    %422 = vmatprep.subr.mxu0 0.0
    %423 = vmatpush1.xpose.msra.mxu0 0.0
    %424 = vmatprep.subr.mxu0 0.0
    %425 = vmatpush1.xpose.msra.mxu0 0.0
    %426 = vmatprep.subr.mxu0 0.0
    %427 = vmatpush1.xpose.msra.mxu0 0.0
    %428 = vmatprep.subr.mxu0 0.0
    %429 = vmatpush1.xpose.msra.mxu0 0.0
    %430 = vmatprep.subr.mxu0 0.0
    %431 = vmatpush1.xpose.msra.mxu0 0.0
    %432 = vmatprep.subr.mxu0 0.0
    %433 = vmatpush1.xpose.msra.mxu0 0.0
    %434 = vmatprep.subr.mxu0 0.0
    %435 = vmatpush1.xpose.msra.mxu0 0.0
    %436 = vmatprep.subr.mxu0 0.0
    %437 = vmatpush1.xpose.msra.mxu0 0.0
    %438 = vmatprep.mubr.f32.mxu0 0.0
    %439 = vmatmul.mubr.f32.gmra.mrb[0].mxu0 %v370
    %v440 = vpop.f32.mrb[0].mxu0
    %v441 = vadd.f32 0.0, %v440
    %v442 = vpop.f32.mrb[0].mxu0
    %443 = vdwg.mxu0
    %445 = vrot.lane.b32.xlu0 %v364, 112
    %v446 = vpop.permute.xlu0 %445
    %v447 = vsel %vm285, %v364, 0
    %v449 = vsel %vm285, %v446, 0
    %451 = vmatprep.subr.mxu0 0.0
    %452 = vmatpush1.xpose.msra.mxu0 %v449
    %453 = vmatprep.subr.mxu0 0.0
    %454 = vmatpush1.xpose.msra.mxu0 0.0
    %455 = vmatprep.subr.mxu0 0.0
    %456 = vmatpush1.xpose.msra.mxu0 0.0
    %457 = vmatprep.subr.mxu0 0.0
    %458 = vmatpush1.xpose.msra.mxu0 0.0
    %459 = vmatprep.subr.mxu0 0.0
    %460 = vmatpush1.xpose.msra.mxu0 0.0
    %461 = vmatprep.subr.mxu0 0.0
    %462 = vmatpush1.xpose.msra.mxu0 0.0
    %463 = vmatprep.subr.mxu0 0.0
    %464 = vmatpush1.xpose.msra.mxu0 0.0
    %465 = vmatprep.subr.mxu0 0.0
    %466 = vmatpush1.xpose.msra.mxu0 0.0
    %467 = vmatprep.subr.mxu0 0.0
    %468 = vmatpush1.xpose.msra.mxu0 0.0
    %469 = vmatprep.subr.mxu0 0.0
    %470 = vmatpush1.xpose.msra.mxu0 0.0
    %471 = vmatprep.subr.mxu0 0.0
    %472 = vmatpush1.xpose.msra.mxu0 0.0
    %473 = vmatprep.subr.mxu0 0.0
    %474 = vmatpush1.xpose.msra.mxu0 0.0
    %475 = vmatprep.subr.mxu0 0.0
    %476 = vmatpush1.xpose.msra.mxu0 0.0
    %477 = vmatprep.subr.mxu0 0.0
    %478 = vmatpush1.xpose.msra.mxu0 0.0
    %479 = vmatprep.subr.mxu0 0.0
    %480 = vmatpush1.xpose.msra.mxu0 0.0
    %481 = vmatprep.subr.mxu0 0.0
    %482 = vmatpush1.xpose.msra.mxu0 0.0
    %483 = vmatprep.subr.mxu0 0.0
    %484 = vmatpush1.xpose.msra.mxu0 0.0
    %485 = vmatprep.subr.mxu0 0.0
    %486 = vmatpush1.xpose.msra.mxu0 0.0
    %487 = vmatprep.subr.mxu0 0.0
    %488 = vmatpush1.xpose.msra.mxu0 0.0
    %489 = vmatprep.subr.mxu0 0.0
    %490 = vmatpush1.xpose.msra.mxu0 0.0
    %491 = vmatprep.subr.mxu0 0.0
    %492 = vmatpush1.xpose.msra.mxu0 0.0
    %493 = vmatprep.subr.mxu0 0.0
    %494 = vmatpush1.xpose.msra.mxu0 0.0
    %495 = vmatprep.subr.mxu0 0.0
    %496 = vmatpush1.xpose.msra.mxu0 0.0
    %497 = vmatprep.subr.mxu0 0.0
    %498 = vmatpush1.xpose.msra.mxu0 0.0
    %499 = vmatprep.subr.mxu0 0.0
    %500 = vmatpush1.xpose.msra.mxu0 0.0
    %501 = vmatprep.subr.mxu0 0.0
    %502 = vmatpush1.xpose.msra.mxu0 0.0
    %503 = vmatprep.subr.mxu0 0.0
    %504 = vmatpush1.xpose.msra.mxu0 0.0
    %505 = vmatprep.subr.mxu0 0.0
    %506 = vmatpush1.xpose.msra.mxu0 0.0
    %507 = vmatprep.subr.mxu0 0.0
    %508 = vmatpush1.xpose.msra.mxu0 0.0
    %509 = vmatprep.subr.mxu0 0.0
    %510 = vmatpush1.xpose.msra.mxu0 0.0
    %511 = vmatprep.subr.mxu0 0.0
    %512 = vmatpush1.xpose.msra.mxu0 0.0
    %513 = vmatprep.subr.mxu0 0.0
    %514 = vmatpush1.xpose.msra.mxu0 0.0
    %515 = vmatprep.mubr.f32.mxu0 0.0
    %516 = vmatmul.mubr.f32.gmra.mrb[0].mxu0 %v447
    %v517 = vpop.f32.mrb[0].mxu0
    %v518 = vadd.f32 0.0, %v517
    %v519 = vpop.f32.mrb[0].mxu0
    %520 = vdwg.mxu0
    %vm521 = vcmask 64512
    %v522 = vsel %vm521, %v441, -inf
    %523 = vmax.xlane.f32.xlu0 %v522
    %v524 = vpop.xlane.xlu0 %523
    %v525 = vsel %vm521, %v518, -inf
    %526 = vmax.xlane.f32.xlu0 %v525
    %v527 = vpop.xlane.xlu0 %526
    %v528 = vsub.f32 %v441, %v524
    %v529 = vsub.f32 %v518, %v527
    %v530 = vmul.f32 %v528, 1.442695
    %v531 = vpow.pop %v530
    %v532 = vmul.f32 %v529, 1.442695
    %v533 = vpow.pop %v532
    %v534 = vsel %vm521, %v531, 0.0
    %535 = vadd.xlane.f32.xlu0 %v534
    %v536 = vpop.xlane.xlu0 %535
    %v537 = vsel %vm521, %v533, 0.0
    %538 = vadd.xlane.f32.xlu0 %v537
    %v539 = vpop.xlane.xlu0 %538
    %v540 = vrcp.pop %v536
    %v541 = vmul.f32 1.0, %v540
    %v542 = vrcp.pop %v539
    %v543 = vmul.f32 1.0, %v542
    %v544 = vmul.f32 %v531, %v541
    %v545 = vmul.f32 %v533, %v543
    %546 = vrot.lane.b32.xlu0 %v359, 96
    %v547 = vpop.permute.xlu0 %546
    %v550 = vsel %vm521, %v544, 0
    %552 = vmatprep.subr.mxu0 0.0
    %553 = vmatpush1.msra.mxu0 %v547
    %554 = vmatprep.subr.mxu0 0.0
    %555 = vmatpush1.msra.mxu0 0.0
    %556 = vmatprep.subr.mxu0 0.0
    %557 = vmatpush1.msra.mxu0 0.0
    %558 = vmatprep.subr.mxu0 0.0
    %559 = vmatpush1.msra.mxu0 0.0
    %560 = vmatprep.subr.mxu0 0.0
    %561 = vmatpush1.msra.mxu0 0.0
    %562 = vmatprep.subr.mxu0 0.0
    %563 = vmatpush1.msra.mxu0 0.0
    %564 = vmatprep.subr.mxu0 0.0
    %565 = vmatpush1.msra.mxu0 0.0
    %566 = vmatprep.subr.mxu0 0.0
    %567 = vmatpush1.msra.mxu0 0.0
    %568 = vmatprep.subr.mxu0 0.0
    %569 = vmatpush1.msra.mxu0 0.0
    %570 = vmatprep.subr.mxu0 0.0
    %571 = vmatpush1.msra.mxu0 0.0
    %572 = vmatprep.subr.mxu0 0.0
    %573 = vmatpush1.msra.mxu0 0.0
    %574 = vmatprep.subr.mxu0 0.0
    %575 = vmatpush1.msra.mxu0 0.0
    %576 = vmatprep.subr.mxu0 0.0
    %577 = vmatpush1.msra.mxu0 0.0
    %578 = vmatprep.subr.mxu0 0.0
    %579 = vmatpush1.msra.mxu0 0.0
    %580 = vmatprep.subr.mxu0 0.0
    %581 = vmatpush1.msra.mxu0 0.0
    %582 = vmatprep.subr.mxu0 0.0
    %583 = vmatpush1.msra.mxu0 0.0
    %584 = vmatprep.subr.mxu0 0.0
    %585 = vmatpush1.msra.mxu0 0.0
    %586 = vmatprep.subr.mxu0 0.0
    %587 = vmatpush1.msra.mxu0 0.0
    %588 = vmatprep.subr.mxu0 0.0
    %589 = vmatpush1.msra.mxu0 0.0
    %590 = vmatprep.subr.mxu0 0.0
    %591 = vmatpush1.msra.mxu0 0.0
    %592 = vmatprep.subr.mxu0 0.0
    %593 = vmatpush1.msra.mxu0 0.0
    %594 = vmatprep.subr.mxu0 0.0
    %595 = vmatpush1.msra.mxu0 0.0
    %596 = vmatprep.subr.mxu0 0.0
    %597 = vmatpush1.msra.mxu0 0.0
    %598 = vmatprep.subr.mxu0 0.0
    %599 = vmatpush1.msra.mxu0 0.0
    %600 = vmatprep.subr.mxu0 0.0
    %601 = vmatpush1.msra.mxu0 0.0
    %602 = vmatprep.subr.mxu0 0.0
    %603 = vmatpush1.msra.mxu0 0.0
    %604 = vmatprep.subr.mxu0 0.0
    %605 = vmatpush1.msra.mxu0 0.0
    %606 = vmatprep.subr.mxu0 0.0
    %607 = vmatpush1.msra.mxu0 0.0
    %608 = vmatprep.subr.mxu0 0.0
    %609 = vmatpush1.msra.mxu0 0.0
    %610 = vmatprep.subr.mxu0 0.0
    %611 = vmatpush1.msra.mxu0 0.0
    %612 = vmatprep.subr.mxu0 0.0
    %613 = vmatpush1.msra.mxu0 0.0
    %614 = vmatprep.subr.mxu0 0.0
    %615 = vmatpush1.msra.mxu0 0.0
    %616 = vmatprep.mubr.f32.mxu0 0.0
    %617 = vmatmul.mubr.f32.gmra.mrb[0].mxu0 %v550
    %v618 = vpop.f32.mrb[0].mxu0
    %v619 = vadd.f32 0.0, %v618
    %v620 = vpop.f32.mrb[0].mxu0
    %621 = vdwg.mxu0
    %622 = vrot.lane.b32.xlu0 %v364, 96
    %v623 = vpop.permute.xlu0 %622
    %v626 = vsel %vm521, %v545, 0
    %628 = vmatprep.subr.mxu0 0.0
    %629 = vmatpush1.msra.mxu0 %v623
    %630 = vmatprep.subr.mxu0 0.0
    %631 = vmatpush1.msra.mxu0 0.0
    %632 = vmatprep.subr.mxu0 0.0
    %633 = vmatpush1.msra.mxu0 0.0
    %634 = vmatprep.subr.mxu0 0.0
    %635 = vmatpush1.msra.mxu0 0.0
    %636 = vmatprep.subr.mxu0 0.0
    %637 = vmatpush1.msra.mxu0 0.0
    %638 = vmatprep.subr.mxu0 0.0
    %639 = vmatpush1.msra.mxu0 0.0
    %640 = vmatprep.subr.mxu0 0.0
    %641 = vmatpush1.msra.mxu0 0.0
    %642 = vmatprep.subr.mxu0 0.0
    %643 = vmatpush1.msra.mxu0 0.0
    %644 = vmatprep.subr.mxu0 0.0
    %645 = vmatpush1.msra.mxu0 0.0
    %646 = vmatprep.subr.mxu0 0.0
    %647 = vmatpush1.msra.mxu0 0.0
    %648 = vmatprep.subr.mxu0 0.0
    %649 = vmatpush1.msra.mxu0 0.0
    %650 = vmatprep.subr.mxu0 0.0
    %651 = vmatpush1.msra.mxu0 0.0
    %652 = vmatprep.subr.mxu0 0.0
    %653 = vmatpush1.msra.mxu0 0.0
    %654 = vmatprep.subr.mxu0 0.0
    %655 = vmatpush1.msra.mxu0 0.0
    %656 = vmatprep.subr.mxu0 0.0
    %657 = vmatpush1.msra.mxu0 0.0
    %658 = vmatprep.subr.mxu0 0.0
    %659 = vmatpush1.msra.mxu0 0.0
    %660 = vmatprep.subr.mxu0 0.0
    %661 = vmatpush1.msra.mxu0 0.0
    %662 = vmatprep.subr.mxu0 0.0
    %663 = vmatpush1.msra.mxu0 0.0
    %664 = vmatprep.subr.mxu0 0.0
    %665 = vmatpush1.msra.mxu0 0.0
    %666 = vmatprep.subr.mxu0 0.0
    %667 = vmatpush1.msra.mxu0 0.0
    %668 = vmatprep.subr.mxu0 0.0
    %669 = vmatpush1.msra.mxu0 0.0
    %670 = vmatprep.subr.mxu0 0.0
    %671 = vmatpush1.msra.mxu0 0.0
    %672 = vmatprep.subr.mxu0 0.0
    %673 = vmatpush1.msra.mxu0 0.0
    %674 = vmatprep.subr.mxu0 0.0
    %675 = vmatpush1.msra.mxu0 0.0
    %676 = vmatprep.subr.mxu0 0.0
    %677 = vmatpush1.msra.mxu0 0.0
    %678 = vmatprep.subr.mxu0 0.0
    %679 = vmatpush1.msra.mxu0 0.0
    %680 = vmatprep.subr.mxu0 0.0
    %681 = vmatpush1.msra.mxu0 0.0
    %682 = vmatprep.subr.mxu0 0.0
    %683 = vmatpush1.msra.mxu0 0.0
    %684 = vmatprep.subr.mxu0 0.0
    %685 = vmatpush1.msra.mxu0 0.0
    %686 = vmatprep.subr.mxu0 0.0
    %687 = vmatpush1.msra.mxu0 0.0
    %688 = vmatprep.subr.mxu0 0.0
    %689 = vmatpush1.msra.mxu0 0.0
    %690 = vmatprep.subr.mxu0 0.0
    %691 = vmatpush1.msra.mxu0 0.0
    %692 = vmatprep.mubr.f32.mxu0 0.0
    %693 = vmatmul.mubr.f32.gmra.mrb[0].mxu0 %v626
    %v694 = vpop.f32.mrb[0].mxu0
    %v695 = vadd.f32 0.0, %v694
    %v696 = vpop.f32.mrb[0].mxu0
    %697 = vdwg.mxu0
    %v698 = vld [vmem:[%s9] sm:$0x1]
    %v700 = vlaneseq
    %v701 = vshrl.u32 %v700, 7
    %v702 = vsub.s32 0, %v701
    %v703 = vrot.slane %v698, %v702
    %v705 = vmul.f32 %v619, %v703
    %v706 = vmul.f32 %v695, %v703
    %v707 = vsel %vm285, %v705, 0.0
    %708 = vadd.xlane.f32.xlu0 %v707
    %v709 = vpop.xlane.xlu0 %708
    %v710 = vsel %vm285, %v706, 0.0
    %711 = vadd.xlane.f32.xlu0 %v710
    %v712 = vpop.xlane.xlu0 %711
    %s713 = sld [smem:[#allocation3]]
    %v714 = vstv %s713
    %v715 = vadd.f32 %v709, %v714
    %v716 = vadd.f32 %v712, %v714
    %v719 = vlaneseq
    %v720 = vshrl.u32 %v719, 7
    %v721 = vsub.s32 %v138, %v720
    %v722 = vrot.slane %v715, %v721
    %v723 = vlaneseq
    %v724 = vshrl.u32 %v723, 7
    %v725 = vsub.s32 %v138, %v724
    %v726 = vrot.slane %v716, %v725
    %vm727 = vcmask 1041409
    %v728 = vsel %vm727, %v726, %v722
    %vm730 = vcmask 58368
    %731 = vst.msk [vmem:[#allocation4] sm:$0x3] %vm730, %v728
    // Predicated region
    $region42: #{tpu_custom_call.1} parent=1 // pred_check
      _
    $region43: #{tpu_custom_call.1} parent=1 // pred_check_branch
      %733 = sbr.rel (0) target = $region45
    $region44: #{tpu_custom_call.1} parent=1 // pred_region
      %s735 = ssub.s32 32, 32
      %736 = vsyncadd [#allocation5], %s735
      %s738 = sshll.u32 [#allocation4], 4
      %s739 = int_to_ptr.vmem [resolvable:$true] %s738
      %741 = dma.vmem_to_hbm [thread:$0]  %s739, 32, %s10, [#allocation5]
    $region45: #{tpu_custom_call.1} parent=1 // pred_fallthru
      _
    // Predicated region
    $region46: #{tpu_custom_call.1} parent=1 // pred_check
      _
    $region47: #{tpu_custom_call.1} parent=1 // pred_check_branch
      %743 = sbr.rel (0) target = $region49
    $region48: #{tpu_custom_call.1} parent=1 // pred_region
      %744 = dma.done [#allocation5], 32
    $region49: #{tpu_custom_call.1} parent=1 // pred_fallthru
      _
    %745 = vsyncpa [#allocation5], 1

</llo_original>
